<compile_context>
chip_gen: v7x
topology: tpu7x:2x2x1
jax: 0.10.0
libtpu: 0.0.40
codegen_flags: <defaults>
</compile_context>

<pallas_src>
import jax
import jax.numpy as jnp
from jax.experimental import pallas as pl
from jax.experimental.pallas import tpu as pltpu

_LANES = 128
_MIN_BLOCK_ROWS = 512        # 256 KiB f32 tile — smallest worth splitting into
_DEFAULT_BLOCK_ROWS = 8192   # 4 MiB f32 tile; 16 MiB total with in+out double-buffering


def _sublane_pack(dtype) -> int:
    """Native sublane packing: 8 for 4-byte, 16 for 2-byte, 32 for 1-byte dtypes."""
    itemsize = jnp.dtype(dtype).itemsize
    return max(8, 32 // itemsize)


def _round_down(x, m):
    return (x // m) * m


def _colu_math(x):
    # CoLU(x) = x / (1 - x * exp(-(x + exp(x))))
    # Exact divide: for x << 0 the inner exp overflows to +inf, denom = +inf and
    # x / inf = 0, matching the PyTorch reference.  (The previous approx
    # reciprocal + Newton chain produced inf * 0 = NaN here and bought no wall
    # time — the op is HBM-bound, so EUP/VALU work is hidden under the DMA.)
    return x / (1.0 - x * jnp.exp(-(x + jnp.exp(x))))


def _colu_kernel(x_ref, o_ref):
    # Compute in f32 (no-op for f32 I/O; bf16/f16 inputs are upcast here only,
    # keeping the HBM traffic — the real bottleneck — at the narrow I/O width).
    x = x_ref[...].astype(jnp.float32)
    o_ref[...] = _colu_math(x).astype(o_ref.dtype)


def _vmem_capacity_bytes() -> int:
    try:
        return int(pltpu.get_tpu_info().vmem_capacity_bytes)
    except Exception:
        return 64 * 1024 * 1024  # conservative default (v7x per-TC VMEM)


def _colu_2d(x2d, block_rows):
    """Runs the Pallas kernel over a lane-dense (rows, 128) slab."""
    rows, lanes = x2d.shape
    assert lanes == _LANES
    dtype = x2d.dtype
    itemsize = jnp.dtype(dtype).itemsize
    pack = _sublane_pack(dtype)

    # --- Block-size selection ------------------------------------------------
    # (a) Generation-aware VMEM cap: 2 input + 2 output buffers must stay well
    #     under physical VMEM (<= ~3/8 of capacity; v7x only has 64 MiB).
    vmem_cap = _vmem_capacity_bytes()
    max_br_vmem = max(pack, _round_down((vmem_cap * 3 // 8) // (4 * _LANES * itemsize), pack))
    br = max(pack, min(block_rows, max_br_vmem))
    # (b) Keep >= ~8 grid steps on medium/large inputs so the "parallel" axis
    #     can shard the stream across both v7x TensorCores (neutral on v5e/v6e),
    #     but never shrink tiles below _MIN_BLOCK_ROWS.
    if rows >= 2 * _MIN_BLOCK_ROWS:
        per_step = max(_MIN_BLOCK_ROWS, _round_down(pl.cdiv(rows, 8), pack))
        br = min(br, per_step)
    br = min(br, rows)

    grid = (pl.cdiv(rows, br),)  # ragged last block handled by Pallas masking

    n = rows * _LANES
    footprint = 4 * br * _LANES * itemsize  # double-buffered in + out
    vmem_limit = min(vmem_cap * 3 // 4, footprint + (8 << 20))

    return pl.pallas_call(
        _colu_kernel,
        out_shape=jax.ShapeDtypeStruct((rows, _LANES), dtype),
        grid=grid,
        in_specs=[pl.BlockSpec((br, _LANES), lambda i: (i, 0))],
        out_specs=pl.BlockSpec((br, _LANES), lambda i: (i, 0)),
        compiler_params=pltpu.CompilerParams(
            # "parallel" so v7x shards the stream across both TensorCores.
            dimension_semantics=("parallel",),
            vmem_limit_bytes=int(vmem_limit),
        ),
        cost_estimate=pl.CostEstimate(
            flops=6 * n,
            transcendentals=2 * n,
            bytes_accessed=2 * n * itemsize,
        ),
    )(x2d)


def colu(x, *, block_rows=_DEFAULT_BLOCK_ROWS):
    """Applies CoLU elementwise via a Pallas TPU kernel.  Accepts any shape/dtype."""
    # TODO(synk): the PyTorch `inplace=True` flag has no equivalent in functional JAX.
    orig_shape = x.shape
    n = x.size
    if n == 0:
        return x

    pack = _sublane_pack(x.dtype)
    align = pack * _LANES
    x_flat = jnp.ravel(x)  # row-major, identical ordering to torch contiguous

    n_main = _round_down(n, align)
    if n_main == 0:
        # Tiny tensor (< one native vreg tile): launch overhead exceeds the work.
        return _colu_math(x_flat.astype(jnp.float32)).astype(x.dtype).reshape(orig_shape)

    main_in = x_flat if n_main == n else x_flat[:n_main]
    main = _colu_2d(main_in.reshape(n_main // _LANES, _LANES), block_rows)
    if n_main == n:
        return main.reshape(orig_shape)

    # Ragged tail (< align elements): plain jnp + single concatenate instead of
    # full-array pad / slice round trips.
    tail = _colu_math(x_flat[n_main:].astype(jnp.float32)).astype(x.dtype)
    return jnp.concatenate([main.reshape(-1), tail]).reshape(orig_shape)


def _colu_ref(x):
    xf = x.astype(jnp.float32)
    return (xf / (1.0 - xf * jnp.exp(-(xf + jnp.exp(xf))))).astype(x.dtype)


if __name__ == "__main__":
    key = jax.random.PRNGKey(0)
    k1, k2, k3, k4 = jax.random.split(key, 4)

    # Small NCHW-like activation, 1024-aligned (pure kernel path).
    x = jax.random.normal(k1, (2, 4, 16, 16), dtype=jnp.float32)
    out = colu(x)
    jax.block_until_ready(out)
    assert out.shape == x.shape and out.dtype == x.dtype
    assert jnp.allclose(out, _colu_ref(x), atol=1e-5, rtol=1e-5), "mismatch (aligned f32)"

    # Odd size below one vreg tile (tiny-tensor fallback path).
    x2 = jax.random.normal(k2, (3, 5, 7), dtype=jnp.float32)
    out2 = colu(x2)
    jax.block_until_ready(out2)
    assert jnp.allclose(out2, _colu_ref(x2), atol=1e-5, rtol=1e-5), "mismatch (tiny)"

    # Non-aligned size above one tile (kernel-on-prefix + jnp tail path),
    # including extreme values that previously produced NaN with approx-recip.
    x3 = jax.random.normal(k3, (5, 1000), dtype=jnp.float32) * 10.0
    x3 = x3.at[0, 0].set(-120.0).at[0, 1].set(120.0)
    out3 = colu(x3)
    jax.block_until_ready(out3)
    assert not bool(jnp.any(jnp.isnan(out3))), "NaN in output"
    assert jnp.allclose(out3, _colu_ref(x3), atol=1e-5, rtol=1e-5), "mismatch (ragged)"

    # bf16 I/O (halved HBM traffic); compute stays f32 inside the kernel.
    x4 = jax.random.normal(k4, (4, 17, 33), dtype=jnp.bfloat16)
    out4 = colu(x4)
    jax.block_until_ready(out4)
    assert out4.dtype == jnp.bfloat16
    assert jnp.allclose(out4.astype(jnp.float32), _colu_ref(x4).astype(jnp.float32),
                        atol=2e-2, rtol=2e-2), "mismatch (bf16)"

    print("KERNEL_OK")
</pallas_src>

<mosaic_0001>
module attributes {stable_mosaic.version = 11 : i64} {
  func.func @_colu_kernel(%arg0: i32, %arg1: memref<16x128xf32, #tpu.memory_space<vmem>>, %arg2: memref<16x128xf32, #tpu.memory_space<vmem>>) attributes {dimension_semantics = [#tpu.dimension_semantics<parallel>], iteration_bounds = array<i64: 1>, scalar_prefetch = 0 : i64, scratch_operands = 0 : i64, tpu.core_type = #tpu.core_type<tc>, window_params = [{transform_indices = @transform_0, window_bounds = array<i64: 16, 128>}, {transform_indices = @transform_1, window_bounds = array<i64: 16, 128>}]} {
    %c0 = arith.constant 0 : index
    %c0_0 = arith.constant 0 : index
    %0 = vector.load %arg1[%c0, %c0_0] : memref<16x128xf32, #tpu.memory_space<vmem>>, vector<16x128xf32>
    %1 = math.exp %0 : vector<16x128xf32>
    %2 = arith.addf %0, %1 : vector<16x128xf32>
    %cst = arith.constant 0.000000e+00 : f32
    %3 = vector.broadcast %cst : f32 to vector<16x128xf32>
    %4 = arith.subf %3, %2 : vector<16x128xf32>
    %5 = math.exp %4 : vector<16x128xf32>
    %6 = arith.mulf %0, %5 : vector<16x128xf32>
    %cst_1 = arith.constant 1.000000e+00 : f32
    %7 = vector.broadcast %cst_1 : f32 to vector<16x128xf32>
    %8 = arith.subf %7, %6 : vector<16x128xf32>
    %9 = arith.divf %0, %8 : vector<16x128xf32>
    %c0_2 = arith.constant 0 : index
    %c0_3 = arith.constant 0 : index
    %10 = vector.load %arg2[%c0_2, %c0_3] : memref<16x128xf32, #tpu.memory_space<vmem>>, vector<16x128xf32>
    tpu.vector_store %arg2[%c0_2, %c0_3], %9 {strides = array<i32>} : memref<16x128xf32, #tpu.memory_space<vmem>>, vector<16x128xf32>,
    return
  }
  func.func @transform_0(%arg0: i32) -> (i32, i32) {
    %c0_i32 = arith.constant 0 : i32
    %c0_i32_0 = arith.constant 0 : i32
    return %arg0, %c0_i32 : i32, i32
  }
  func.func @transform_1(%arg0: i32) -> (i32, i32) {
    %c0_i32 = arith.constant 0 : i32
    %c0_i32_0 = arith.constant 0 : i32
    return %arg0, %c0_i32 : i32, i32
  }
}

</mosaic_0001>

<llo_original>
// kernel: tpu_custom_call.1
$region0: #{tpu_custom_call.1}
  #allocation0 [shape = 'u32[]', space=smem, size = 0x4, offset = 0x4, fixed_abs, tag = 'smem constant byte address 0x4 - core index']
  #allocation1 [shape = 'u32[144,128]{1,0:T(1,128)}', space=vmem, size = 0x12000, scoped, tag = 'internal scratch']
  %s0 = inlined_call_operand.hbm [shape: f32[16,128], index: 0, kind: input, shape index: {}]
  %s1 = inlined_call_operand.hbm [shape: f32[16,128], index: 1, kind: output, shape index: {}]
  %s2 = sld [smem:[#allocation0]]
  $region18: #{tpu_custom_call.1} parent=0
    _
  %s4 = ssub.s32 1, %s2
  %s5 = scalar_select 0, %s4, %s2
  $region1: #{tpu_custom_call.1} parent=0
    #allocation2 [shape = 'u8[8192]{0}', space=vmem, size = 0x2000, scoped, tag = 'input window, operand 0, single buffered']
    #allocation3 [shape = 's32[1]{0}', space=sflag, size = 0x4, scoped, tag = 'scoped memory for tpu_custom_call.1']
    #allocation4 [shape = 's32[1]{0}', space=sflag, size = 0x4, scoped, tag = 'scoped memory for tpu_custom_call.1']
    #allocation5 [shape = 'u8[8192]{0}', space=vmem, size = 0x2000, scoped, tag = 'output window, operand 0, single buffered']
    %6 = vsyncpa [#allocation3], 0
    %7 = vsyncpa [#allocation4], 0
    // Predicated region
    $region2: #{tpu_custom_call.1} parent=1 // pred_check
      _
    $region3: #{tpu_custom_call.1} parent=1 // pred_check_branch
      %9 = sbr.rel (0) target = $region5
    $region4: #{tpu_custom_call.1} parent=1 // pred_region
      %s11 = ssub.s32 256, 256
      %12 = vsyncadd [#allocation3], %s11
      %s13 = sshll.u32 [#allocation2], 4
      %s14 = int_to_ptr.vmem [resolvable:$true] %s13
      %19 = dma.hbm_to_vmem [thread:$0]  %s0, 256, %s14, [#allocation3], 128, 128, 8
    $region5: #{tpu_custom_call.1} parent=1 // pred_fallthru
      _
    // Predicated region
    $region6: #{tpu_custom_call.1} parent=1 // pred_check
      _
    $region7: #{tpu_custom_call.1} parent=1 // pred_check_branch
      %21 = sbr.rel (0) target = $region9
    $region8: #{tpu_custom_call.1} parent=1 // pred_region
      %22 = dma.done [#allocation3], 256
    $region9: #{tpu_custom_call.1} parent=1 // pred_fallthru
      _
    %v23 = vld [vmem:[#allocation2] sm:$0xff]
    %v24 = vld [vmem:[#allocation2 + $0x8] sm:$0xff]
    %v25 = vmul.f32 %v23, 1.442695
    %v26 = vpow.pop %v25
    %v27 = vmul.f32 %v24, 1.442695
    %v28 = vpow.pop %v27
    %v29 = vadd.f32 %v23, %v26
    %v30 = vadd.f32 %v24, %v28
    %v31 = vsub.f32 0.0, %v29
    %v32 = vsub.f32 0.0, %v30
    %v33 = vmul.f32 %v31, 1.442695
    %v34 = vpow.pop %v33
    %v35 = vmul.f32 %v32, 1.442695
    %v36 = vpow.pop %v35
    %v37 = vmul.f32 %v23, %v34
    %v38 = vmul.f32 %v24, %v36
    %v39 = vsub.f32 1.0, %v37
    %v40 = vsub.f32 1.0, %v38
    %v41 = vrcp.pop %v39
    %v42 = vmul.f32 %v23, %v41
    %v43 = vrcp.pop %v40
    %v44 = vmul.f32 %v24, %v43
    %45 = vst [vmem:[#allocation5] sm:$0xff] %v42
    %46 = vst [vmem:[#allocation5 + $0x8] sm:$0xff] %v44
    // Predicated region
    $region10: #{tpu_custom_call.1} parent=1 // pred_check
      _
    $region11: #{tpu_custom_call.1} parent=1 // pred_check_branch
      %48 = sbr.rel (0) target = $region13
    $region12: #{tpu_custom_call.1} parent=1 // pred_region
      %s50 = ssub.s32 256, 256
      %51 = vsyncadd [#allocation4], %s50
      %s52 = sshll.u32 [#allocation5], 4
      %s53 = int_to_ptr.vmem [resolvable:$true] %s52
      %58 = dma.vmem_to_hbm [thread:$0]  %s53, 256, %s1, [#allocation4], 128, 128, 8
    $region13: #{tpu_custom_call.1} parent=1 // pred_fallthru
      _
    // Predicated region
    $region14: #{tpu_custom_call.1} parent=1 // pred_check
      _
    $region15: #{tpu_custom_call.1} parent=1 // pred_check_branch
      %60 = sbr.rel (0) target = $region17
    $region16: #{tpu_custom_call.1} parent=1 // pred_region
      %61 = dma.done [#allocation4], 256
    $region17: #{tpu_custom_call.1} parent=1 // pred_fallthru
      _
    %62 = vsyncpa [#allocation3], 1
    %63 = vsyncpa [#allocation4], 1

</llo_original>
